<compile_context>
chip_gen: v7x
topology: tpu7x:2x2x1
jax: 0.10.0
libtpu: 0.0.40
codegen_flags: <defaults>
</compile_context>

<pallas_src>
import functools
import math

import jax
import jax.numpy as jnp
from jax import lax
from jax.experimental import pallas as pl
from jax.experimental.pallas import tpu as pltpu

EPS = 1e-12  # matches torch.nn.functional.normalize default eps


def _netvlad_kernel(x_ref, w_ref, c_ref, o_ref, acc_ref, *,
                    bt, cpt, s_valid, sp, use_bf16_mxu):
    """One grid step: `bt` images x `cpt` spatial columns per image.

    x_ref:   (1, D, bt*cpt)  descriptors, images packed along the lane axis
    w_ref:   (K, D)          1x1-conv assignment weights
    c_ref:   (K, D)          cluster centroids
    o_ref:   (bt, K, D)      normalized VLAD (written on the last column tile)
    acc_ref: (bt, K, D) f32  running per-image VLAD accumulator (VMEM scratch)
    """
    mx_dtype = jnp.bfloat16 if use_bf16_mxu else jnp.float32
    eps2 = jnp.float32(EPS * EPS)
    t = pl.program_id(1)

    @pl.when(t == 0)
    def _init():
        acc_ref[...] = jnp.zeros_like(acc_ref)

    # ---- batched front-end over the whole lane-packed column tile --------
    x = x_ref[0].astype(jnp.float32)                            # (D, ct)
    # descriptor-wise L2 norm over D: x / max(||x||, eps)
    ss = jnp.sum(x * x, axis=0, keepdims=True)                  # (1, ct)
    xn = x * lax.rsqrt(jnp.maximum(ss, eps2))                   # (D, ct)
    xn_mx = xn.astype(mx_dtype)

    # soft assignment: one wide MXU matmul over every image/column in the tile
    logits = lax.dot_general(
        w_ref[...].astype(mx_dtype), xn_mx, (((1,), (0,)), ((), ())),
        preferred_element_type=jnp.float32)                     # (K, ct)
    m = jnp.max(logits, axis=0, keepdims=True)                  # (1, ct)
    e = jnp.exp(logits - m)                                     # (K, ct)
    denom = jnp.sum(e, axis=0, keepdims=True)                   # (1, ct)
    if use_bf16_mxu:
        a = e * pl.reciprocal(denom, approx=True)               # EUP vrcp
    else:
        a = e / denom                                           # exact (v5e/f32 path)

    if sp != s_valid:
        # Zero the soft-assignments of zero-padded spatial columns so they do
        # not contribute to sum_s a[k, s] (their xn is already exactly zero).
        col = lax.broadcasted_iota(jnp.int32, (1, a.shape[1]), 1)
        local = (col % cpt) if bt > 1 else (col + t * cpt)
        a = jnp.where(local < s_valid, a, jnp.float32(0.0))

    # ---- per-image VLAD aggregation (tiny static tail loop) --------------
    c = c_ref[...].astype(jnp.float32)                          # (K, D)
    for b in range(bt):
        sl = slice(b * cpt, (b + 1) * cpt)
        a_b = a[:, sl]                                          # (K, cpt)
        agg = lax.dot_general(                                  # (K, D)
            a_b.astype(mx_dtype), xn_mx[:, sl], (((1,), (1,)), ((), ())),
            preferred_element_type=jnp.float32)
        a_sum = jnp.sum(a_b, axis=1, keepdims=True)             # (K, 1)
        # vlad[k,d] = sum_s a[k,s]*(xn[d,s] - c[k,d]) = agg - a_sum*c
        acc_ref[b] += agg - a_sum * c

    # ---- finalize (intra + global L2 norm) on the last column tile -------
    @pl.when(t == pl.num_programs(1) - 1)
    def _finalize():
        for b in range(bt):
            v = acc_ref[b]                                      # (K, D) f32
            intra = jnp.sum(v * v, axis=1, keepdims=True)       # (K, 1)
            v = v * lax.rsqrt(jnp.maximum(intra, eps2))
            tot = jnp.sum(v * v, axis=(0, 1), keepdims=True)    # (1, 1)
            v = v * lax.rsqrt(jnp.maximum(tot, eps2))
            o_ref[b] = v.astype(o_ref.dtype)


def _tpu_vmem_capacity_bytes():
    try:
        return int(pltpu.get_tpu_info().vmem_capacity_bytes)
    except Exception:
        return 64 * 1024 * 1024       # conservative default (v7x per-core VMEM)


def _device_kind():
    try:
        return jax.devices()[0].device_kind.lower()
    except Exception:
        return ""


def _multi_tensorcore_chip():
    # Chips whose TensorCores share one Pallas grid: v4/v5p megacore, v7x.
    kind = _device_kind()
    return any(tag in kind for tag in ("v7", "v4", "v5p"))


def _default_use_bf16():
    # v5e has no bf16 VPU to hide the casts and its f32 MXU handles these
    # small matmuls fine; keep everything f32 there (also tighter accuracy).
    kind = _device_kind()
    return not ("v5 lite" in kind or "v5e" in kind or "v5litepod" in kind)


def _plan_tiling(n, d, s, k, budget_bytes, max_bt):
    """Pick (bt, sp, ct): images per step, padded columns per image, and
    lane-packed columns per grid step."""
    def step_bytes(bt, ct):
        return (2 * d * ct * 4              # double-buffered input block
                + 2 * bt * k * d * 4        # double-buffered output block
                + 2 * 2 * k * d * 4         # weight + centroid blocks
                + bt * k * d * 4            # f32 accumulator scratch
                + (2 * d + 3 * k) * ct * 4)  # in-kernel f32 temporaries

    best = None
    for bt in range(1, max(1, min(max_bt, n)) + 1):
        if bt == 1:
            sp = s                            # block spans the full S axis
        else:
            q = 128 // math.gcd(bt, 128)      # lane-dense: (bt*sp) % 128 == 0
            sp = -(-s // q) * q
        ct = bt * sp
        if step_bytes(bt, ct) > budget_bytes:
            continue
        n_blocks = -(-n // bt)
        # cost ~ grid steps x lane width (in 128-lane rows); prefer larger bt
        key = (n_blocks * (-(-ct // 128)), -bt)
        if best is None or key < best[0]:
            best = (key, (bt, sp, ct))
    if best is not None:
        return best[1]
    # Large-S fallback: one image per block, tile its (padded) columns and
    # accumulate across the "arbitrary" grid axis.
    sp = -(-s // 128) * 128
    m = sp // 128
    ct = 128
    for div in range(m, 0, -1):
        if m % div == 0 and step_bytes(1, div * 128) <= budget_bytes:
            ct = div * 128
            break
    return 1, sp, ct


def netvlad_forward(x_nchw, conv_weight, centroids, *, use_bf16_mxu=None):
    """NetVLAD forward.

    x_nchw:      (N, D, H, W) float32
    conv_weight: (K, D)       float32  (1x1 conv weight, squeezed)
    centroids:   (K, D)       float32
    returns:     (N, K*D)     float32
    """
    n, d, h, w = x_nchw.shape
    k = conv_weight.shape[0]
    s = h * w

    if use_bf16_mxu is None:
        use_bf16_mxu = _default_use_bf16()

    vmem_cap = _tpu_vmem_capacity_bytes()
    vmem_limit = min(int(vmem_cap * 0.7), 64 * 1024 * 1024)
    budget = int(vmem_limit * 0.75)

    max_bt = 8
    if _multi_tensorcore_chip() and n >= 2:
        # keep >= 2 batch grid steps so the "parallel" axis can be sharded
        # across both TensorCores (v7x) / megacore halves (v4, v5p).
        max_bt = min(max_bt, max(1, n // 2))

    bt, sp, ct = _plan_tiling(n, d, s, k, budget, max_bt)
    cpt = ct // bt
    s_tiles = (bt * sp) // ct
    n_pad = -(-n // bt) * bt
    n_blocks = n_pad // bt

    x = x_nchw.reshape(n, d, s)                  # free contiguous reshape
    if n_pad != n:
        x = jnp.pad(x, ((0, n_pad - n), (0, 0), (0, 0)))
    if sp != s:
        x = jnp.pad(x, ((0, 0), (0, 0), (0, sp - s)))

    if bt > 1:
        # Lane-pack `bt` images along the minor axis (one-time XLA layout
        # transform in HBM) so all intermediates / MXU operands are lane-dense.
        x_lin = jnp.transpose(x, (1, 0, 2)).reshape(1, d, n_pad * sp)
        x_spec = pl.BlockSpec((1, d, ct), lambda i, t: (0, 0, i))
    else:
        # (N, D, Sp) already has the right per-image minor layout.
        x_lin = x
        x_spec = pl.BlockSpec((1, d, ct), lambda i, t: (i, 0, t))

    kernel = functools.partial(
        _netvlad_kernel, bt=bt, cpt=cpt, s_valid=s, sp=sp,
        use_bf16_mxu=use_bf16_mxu)

    out = pl.pallas_call(
        kernel,
        out_shape=jax.ShapeDtypeStruct((n_pad, k, d), x_nchw.dtype),
        grid_spec=pltpu.PrefetchScalarGridSpec(
            num_scalar_prefetch=0,
            grid=(n_blocks, s_tiles),
            in_specs=[
                x_spec,
                pl.BlockSpec((k, d), lambda i, t: (0, 0)),
                pl.BlockSpec((k, d), lambda i, t: (0, 0)),
            ],
            out_specs=pl.BlockSpec((bt, k, d), lambda i, t: (i, 0, 0)),
            scratch_shapes=[pltpu.VMEM((bt, k, d), jnp.float32)],
        ),
        compiler_params=pltpu.CompilerParams(
            dimension_semantics=("parallel", "arbitrary"),
            vmem_limit_bytes=vmem_limit),
    )(x_lin, conv_weight, centroids)

    # drop batch padding; (N, K, D) -> (N, K*D) is a free contiguous reshape
    return out[:n].reshape(n, k * d)


def netvlad_reference(x_nchw, conv_weight, centroids):
    """Pure-JAX reference mirroring the PyTorch forward exactly (f32)."""
    n, d, h, w = x_nchw.shape
    x = x_nchw.astype(jnp.float32)
    nrm = jnp.sqrt(jnp.sum(x * x, axis=1, keepdims=True))
    x = x / jnp.maximum(nrm, EPS)                         # F.normalize dim=1
    x_flat = x.reshape(n, d, -1)                          # (N, D, S)
    soft = jnp.einsum("kd,nds->nks", conv_weight, x_flat)
    soft = jax.nn.softmax(soft, axis=1)                   # (N, K, S)
    vlad = jnp.einsum("nks,nds->nkd", soft, x_flat) \
        - jnp.sum(soft, axis=-1)[:, :, None] * centroids[None, :, :]
    vlad = vlad / jnp.maximum(
        jnp.sqrt(jnp.sum(vlad * vlad, axis=2, keepdims=True)), EPS)
    vlad = vlad.reshape(n, -1)
    vlad = vlad / jnp.maximum(
        jnp.sqrt(jnp.sum(vlad * vlad, axis=1, keepdims=True)), EPS)
    return vlad


if __name__ == "__main__":
    # Module defaults: clusters_num=64, dim=128; small spatial extent.
    N, D, H, W = 2, 128, 8, 8
    K = 64

    key = jax.random.PRNGKey(0)
    kx, kw, kc = jax.random.split(key, 3)

    x = jax.random.normal(kx, (N, D, H, W), dtype=jnp.float32)
    # Deterministic init standing in for nn.Conv2d default / torch.rand:
    bound = 1.0 / (D ** 0.5)          # 1x1 kernel fan-in = D
    conv_weight = jax.random.uniform(
        kw, (K, D), minval=-bound, maxval=bound, dtype=jnp.float32)
    centroids = jax.random.uniform(kc, (K, D), dtype=jnp.float32)

    out = netvlad_forward(x, conv_weight, centroids)
    out = jax.block_until_ready(out)

    ref = netvlad_reference(x, conv_weight, centroids)
    assert out.shape == (N, K * D)
    max_err = float(jnp.max(jnp.abs(out - ref)))
    # bf16 MXU operands + approx softmax reciprocal (v6e/v7x path) need a
    # loose absolute tolerance; the f32 path (v5e) is far tighter.
    assert max_err < 3e-3, f"max abs err {max_err}"

    print("KERNEL_OK")
</pallas_src>

<mosaic_0001>
module attributes {stable_mosaic.version = 11 : i64} {
  func.func @_netvlad_kernel(%arg0: i32, %arg1: i32, %arg2: memref<1x128x128xf32, #tpu.memory_space<vmem>>, %arg3: memref<64x128xf32, #tpu.memory_space<vmem>>, %arg4: memref<64x128xf32, #tpu.memory_space<vmem>>, %arg5: memref<2x64x128xf32, #tpu.memory_space<vmem>>, %arg6: memref<2x64x128xf32, #tpu.memory_space<vmem>>) attributes {dimension_semantics = [#tpu.dimension_semantics<parallel>, #tpu.dimension_semantics<arbitrary>], iteration_bounds = array<i64: 1, 1>, scalar_prefetch = 0 : i64, scratch_operands = 1 : i64, tpu.core_type = #tpu.core_type<tc>, window_params = [{transform_indices = @transform_0, window_bounds = array<i64: 1, 128, 128>}, {pipeline_mode = #tpu.pipeline_mode<synchronous>, transform_indices = @transform_1, window_bounds = array<i64: 64, 128>}, {pipeline_mode = #tpu.pipeline_mode<synchronous>, transform_indices = @transform_2, window_bounds = array<i64: 64, 128>}, {transform_indices = @transform_3, window_bounds = array<i64: 2, 64, 128>}]} {
    %c0_i32 = arith.constant 0 : i32
    %0 = arith.cmpi eq, %arg1, %c0_i32 : i32
    %1 = arith.extui %0 : i1 to i32
    %c0_i32_0 = arith.constant 0 : i32
    %2 = arith.cmpi ne, %1, %c0_i32_0 : i32
    scf.if %2 {
      %cst_29 = arith.constant 0.000000e+00 : f32
      %61 = vector.broadcast %cst_29 : f32 to vector<2x64x128xf32>
      %c0_30 = arith.constant 0 : index
      %c0_31 = arith.constant 0 : index
      %c0_32 = arith.constant 0 : index
      %62 = vector.load %arg6[%c0_30, %c0_31, %c0_32] : memref<2x64x128xf32, #tpu.memory_space<vmem>>, vector<2x64x128xf32>
      tpu.vector_store %arg6[%c0_30, %c0_31, %c0_32], %61 {strides = array<i32>} : memref<2x64x128xf32, #tpu.memory_space<vmem>>, vector<2x64x128xf32>,
    } else {
    }
    %c0 = arith.constant 0 : index
    %c0_1 = arith.constant 0 : index
    %c0_2 = arith.constant 0 : index
    %3 = vector.load %arg2[%c0, %c0_1, %c0_2] : memref<1x128x128xf32, #tpu.memory_space<vmem>>, vector<1x128x128xf32>
    %4 = vector.shape_cast %3 : vector<1x128x128xf32> to vector<128x128xf32>
    %5 = arith.mulf %4, %4 : vector<128x128xf32>
    %cst = arith.constant dense<0.000000e+00> : vector<128xf32>
    %6 = vector.multi_reduction <add>, %5, %cst [0] : vector<128x128xf32> to vector<128xf32>
    %7 = vector.shape_cast %6 : vector<128xf32> to vector<1x128xf32>
    %cst_3 = arith.constant 1.000000e-24 : f32
    %8 = vector.broadcast %cst_3 : f32 to vector<1x128xf32>
    %9 = arith.maximumf %7, %8 : vector<1x128xf32>
    %10 = math.rsqrt %9 : vector<1x128xf32>
    %11 = vector.broadcast %10 : vector<1x128xf32> to vector<128x128xf32>
    %12 = arith.mulf %4, %11 : vector<128x128xf32>
    %13 = arith.truncf %12 : vector<128x128xf32> to vector<128x128xbf16>
    %c0_4 = arith.constant 0 : index
    %c0_5 = arith.constant 0 : index
    %14 = vector.load %arg3[%c0_4, %c0_5] : memref<64x128xf32, #tpu.memory_space<vmem>>, vector<64x128xf32>
    %15 = arith.truncf %14 : vector<64x128xf32> to vector<64x128xbf16>
    %cst_6 = arith.constant dense<0.000000e+00> : vector<64x128xf32>
    %16 = tpu.matmul %15, %13, %cst_6 {dimension_numbers = #tpu.dot_dimension_numbers<[1], [0], [0], [1], [0, 0, 1, 1], [], []>} : vector<64x128xbf16>, vector<128x128xbf16>, vector<64x128xf32> -> vector<64x128xf32>
    %cst_7 = arith.constant dense<0xFF800000> : vector<128xf32>
    %17 = vector.multi_reduction <maximumf>, %16, %cst_7 [0] : vector<64x128xf32> to vector<128xf32>
    %18 = vector.shape_cast %17 : vector<128xf32> to vector<1x128xf32>
    %19 = vector.broadcast %18 : vector<1x128xf32> to vector<64x128xf32>
    %20 = arith.subf %16, %19 : vector<64x128xf32>
    %21 = math.exp %20 : vector<64x128xf32>
    %cst_8 = arith.constant dense<0.000000e+00> : vector<128xf32>
    %22 = vector.multi_reduction <add>, %21, %cst_8 [0] : vector<64x128xf32> to vector<128xf32>
    %23 = vector.shape_cast %22 : vector<128xf32> to vector<1x128xf32>
    %24 = tpu.reciprocal %23 {approx = true} : vector<1x128xf32> -> vector<1x128xf32>
    %25 = vector.broadcast %24 : vector<1x128xf32> to vector<64x128xf32>
    %26 = arith.mulf %21, %25 : vector<64x128xf32>
    %c0_9 = arith.constant 0 : index
    %c0_10 = arith.constant 0 : index
    %27 = vector.load %arg4[%c0_9, %c0_10] : memref<64x128xf32, #tpu.memory_space<vmem>>, vector<64x128xf32>
    %28 = vector.extract_strided_slice %26 {offsets = [0, 0], sizes = [64, 64], strides = [1, 1]} : vector<64x128xf32> to vector<64x64xf32>
    %29 = arith.truncf %28 : vector<64x64xf32> to vector<64x64xbf16>
    %30 = vector.extract_strided_slice %13 {offsets = [0, 0], sizes = [128, 64], strides = [1, 1]} : vector<128x128xbf16> to vector<128x64xbf16>
    %cst_11 = arith.constant dense<0.000000e+00> : vector<64x128xf32>
    %31 = tpu.matmul %29, %30, %cst_11 {dimension_numbers = #tpu.dot_dimension_numbers<[1], [1], [0], [0], [0, 0, 1, 0], [], []>} : vector<64x64xbf16>, vector<128x64xbf16>, vector<64x128xf32> -> vector<64x128xf32>
    %cst_12 = arith.constant dense<0.000000e+00> : vector<64xf32>
    %32 = vector.multi_reduction <add>, %28, %cst_12 [1] : vector<64x64xf32> to vector<64xf32>
    %33 = vector.shape_cast %32 : vector<64xf32> to vector<64x1xf32>
    %c0_13 = arith.constant 0 : index
    %c0_14 = arith.constant 0 : index
    %c0_15 = arith.constant 0 : index
    %34 = vector.load %arg6[%c0_13, %c0_14, %c0_15] : memref<2x64x128xf32, #tpu.memory_space<vmem>>, vector<1x64x128xf32>
    %35 = vector.shape_cast %34 : vector<1x64x128xf32> to vector<64x128xf32>
    %36 = vector.broadcast %33 : vector<64x1xf32> to vector<64x128xf32>
    %37 = arith.mulf %36, %27 : vector<64x128xf32>
    %38 = arith.subf %31, %37 : vector<64x128xf32>
    %39 = arith.addf %35, %38 : vector<64x128xf32>
    %c0_16 = arith.constant 0 : index
    %c0_17 = arith.constant 0 : index
    %c0_18 = arith.constant 0 : index
    %40 = vector.load %arg6[%c0_16, %c0_17, %c0_18] : memref<2x64x128xf32, #tpu.memory_space<vmem>>, vector<1x64x128xf32>
    %41 = vector.shape_cast %40 : vector<1x64x128xf32> to vector<64x128xf32>
    %42 = vector.shape_cast %39 : vector<64x128xf32> to vector<1x64x128xf32>
    tpu.vector_store %arg6[%c0_16, %c0_17, %c0_18], %42 {strides = array<i32>} : memref<2x64x128xf32, #tpu.memory_space<vmem>>, vector<1x64x128xf32>,
    %43 = vector.extract_strided_slice %26 {offsets = [0, 64], sizes = [64, 64], strides = [1, 1]} : vector<64x128xf32> to vector<64x64xf32>
    %44 = arith.truncf %43 : vector<64x64xf32> to vector<64x64xbf16>
    %45 = vector.extract_strided_slice %13 {offsets = [0, 64], sizes = [128, 64], strides = [1, 1]} : vector<128x128xbf16> to vector<128x64xbf16>
    %cst_19 = arith.constant dense<0.000000e+00> : vector<64x128xf32>
    %46 = tpu.matmul %44, %45, %cst_19 {dimension_numbers = #tpu.dot_dimension_numbers<[1], [1], [0], [0], [0, 0, 1, 0], [], []>} : vector<64x64xbf16>, vector<128x64xbf16>, vector<64x128xf32> -> vector<64x128xf32>
    %cst_20 = arith.constant dense<0.000000e+00> : vector<64xf32>
    %47 = vector.multi_reduction <add>, %43, %cst_20 [1] : vector<64x64xf32> to vector<64xf32>
    %48 = vector.shape_cast %47 : vector<64xf32> to vector<64x1xf32>
    %c1 = arith.constant 1 : index
    %c0_21 = arith.constant 0 : index
    %c0_22 = arith.constant 0 : index
    %49 = vector.load %arg6[%c1, %c0_21, %c0_22] : memref<2x64x128xf32, #tpu.memory_space<vmem>>, vector<1x64x128xf32>
    %50 = vector.shape_cast %49 : vector<1x64x128xf32> to vector<64x128xf32>
    %51 = vector.broadcast %48 : vector<64x1xf32> to vector<64x128xf32>
    %52 = arith.mulf %51, %27 : vector<64x128xf32>
    %53 = arith.subf %46, %52 : vector<64x128xf32>
    %54 = arith.addf %50, %53 : vector<64x128xf32>
    %c1_23 = arith.constant 1 : index
    %c0_24 = arith.constant 0 : index
    %c0_25 = arith.constant 0 : index
    %55 = vector.load %arg6[%c1_23, %c0_24, %c0_25] : memref<2x64x128xf32, #tpu.memory_space<vmem>>, vector<1x64x128xf32>
    %56 = vector.shape_cast %55 : vector<1x64x128xf32> to vector<64x128xf32>
    %57 = vector.shape_cast %54 : vector<64x128xf32> to vector<1x64x128xf32>
    tpu.vector_store %arg6[%c1_23, %c0_24, %c0_25], %57 {strides = array<i32>} : memref<2x64x128xf32, #tpu.memory_space<vmem>>, vector<1x64x128xf32>,
    %c0_i32_26 = arith.constant 0 : i32
    %58 = arith.cmpi eq, %arg1, %c0_i32_26 : i32
    %59 = arith.extui %58 : i1 to i32
    %cst_27 = arith.constant 1.000000e-24 : f32
    %c0_i32_28 = arith.constant 0 : i32
    %60 = arith.cmpi ne, %59, %c0_i32_28 : i32
    scf.if %60 {
      %c0_29 = arith.constant 0 : index
      %c0_30 = arith.constant 0 : index
      %c0_31 = arith.constant 0 : index
      %61 = vector.load %arg6[%c0_29, %c0_30, %c0_31] : memref<2x64x128xf32, #tpu.memory_space<vmem>>, vector<1x64x128xf32>
      %62 = vector.shape_cast %61 : vector<1x64x128xf32> to vector<64x128xf32>
      %63 = arith.mulf %62, %62 : vector<64x128xf32>
      %cst_32 = arith.constant dense<0.000000e+00> : vector<64xf32>
      %64 = vector.multi_reduction <add>, %63, %cst_32 [1] : vector<64x128xf32> to vector<64xf32>
      %65 = vector.shape_cast %64 : vector<64xf32> to vector<64x1xf32>
      %66 = vector.broadcast %cst_27 : f32 to vector<64x1xf32>
      %67 = arith.maximumf %65, %66 : vector<64x1xf32>
      %68 = math.rsqrt %67 : vector<64x1xf32>
      %69 = vector.broadcast %68 : vector<64x1xf32> to vector<64x128xf32>
      %70 = arith.mulf %62, %69 : vector<64x128xf32>
      %71 = arith.mulf %70, %70 : vector<64x128xf32>
      %72 = vector.shape_cast %71 : vector<64x128xf32> to vector<1x64x128xf32>
      %cst_33 = arith.constant dense<0.000000e+00> : vector<1xf32>
      %73 = vector.multi_reduction <add>, %72, %cst_33 [1, 2] : vector<1x64x128xf32> to vector<1xf32>
      %74 = vector.shape_cast %73 : vector<1xf32> to vector<1x1x1xf32>
      %75 = vector.extract %74[0, 0, 0] : f32 from vector<1x1x1xf32>
      %76 = vector.broadcast %75 : f32 to vector<1x1xf32>
      %77 = vector.broadcast %cst_27 : f32 to vector<1x1xf32>
      %78 = arith.maximumf %76, %77 : vector<1x1xf32>
      %79 = math.rsqrt %78 : vector<1x1xf32>
      %80 = vector.broadcast %79 : vector<1x1xf32> to vector<64x128xf32>
      %81 = arith.mulf %70, %80 : vector<64x128xf32>
      %c0_34 = arith.constant 0 : index
      %c0_35 = arith.constant 0 : index
      %c0_36 = arith.constant 0 : index
      %82 = vector.load %arg5[%c0_34, %c0_35, %c0_36] : memref<2x64x128xf32, #tpu.memory_space<vmem>>, vector<1x64x128xf32>
      %83 = vector.shape_cast %82 : vector<1x64x128xf32> to vector<64x128xf32>
      %84 = vector.shape_cast %81 : vector<64x128xf32> to vector<1x64x128xf32>
      tpu.vector_store %arg5[%c0_34, %c0_35, %c0_36], %84 {strides = array<i32>} : memref<2x64x128xf32, #tpu.memory_space<vmem>>, vector<1x64x128xf32>,
      %c1_37 = arith.constant 1 : index
      %c0_38 = arith.constant 0 : index
      %c0_39 = arith.constant 0 : index
      %85 = vector.load %arg6[%c1_37, %c0_38, %c0_39] : memref<2x64x128xf32, #tpu.memory_space<vmem>>, vector<1x64x128xf32>
      %86 = vector.shape_cast %85 : vector<1x64x128xf32> to vector<64x128xf32>
      %87 = arith.mulf %86, %86 : vector<64x128xf32>
      %cst_40 = arith.constant dense<0.000000e+00> : vector<64xf32>
      %88 = vector.multi_reduction <add>, %87, %cst_40 [1] : vector<64x128xf32> to vector<64xf32>
      %89 = vector.shape_cast %88 : vector<64xf32> to vector<64x1xf32>
      %90 = vector.broadcast %cst_27 : f32 to vector<64x1xf32>
      %91 = arith.maximumf %89, %90 : vector<64x1xf32>
      %92 = math.rsqrt %91 : vector<64x1xf32>
      %93 = vector.broadcast %92 : vector<64x1xf32> to vector<64x128xf32>
      %94 = arith.mulf %86, %93 : vector<64x128xf32>
      %95 = arith.mulf %94, %94 : vector<64x128xf32>
      %96 = vector.shape_cast %95 : vector<64x128xf32> to vector<1x64x128xf32>
      %cst_41 = arith.constant dense<0.000000e+00> : vector<1xf32>
      %97 = vector.multi_reduction <add>, %96, %cst_41 [1, 2] : vector<1x64x128xf32> to vector<1xf32>
      %98 = vector.shape_cast %97 : vector<1xf32> to vector<1x1x1xf32>
      %99 = vector.extract %98[0, 0, 0] : f32 from vector<1x1x1xf32>
      %100 = vector.broadcast %99 : f32 to vector<1x1xf32>
      %101 = vector.broadcast %cst_27 : f32 to vector<1x1xf32>
      %102 = arith.maximumf %100, %101 : vector<1x1xf32>
      %103 = math.rsqrt %102 : vector<1x1xf32>
      %104 = vector.broadcast %103 : vector<1x1xf32> to vector<64x128xf32>
      %105 = arith.mulf %94, %104 : vector<64x128xf32>
      %c1_42 = arith.constant 1 : index
      %c0_43 = arith.constant 0 : index
      %c0_44 = arith.constant 0 : index
      %106 = vector.load %arg5[%c1_42, %c0_43, %c0_44] : memref<2x64x128xf32, #tpu.memory_space<vmem>>, vector<1x64x128xf32>
      %107 = vector.shape_cast %106 : vector<1x64x128xf32> to vector<64x128xf32>
      %108 = vector.shape_cast %105 : vector<64x128xf32> to vector<1x64x128xf32>
      tpu.vector_store %arg5[%c1_42, %c0_43, %c0_44], %108 {strides = array<i32>} : memref<2x64x128xf32, #tpu.memory_space<vmem>>, vector<1x64x128xf32>,
    } else {
    }
    return
  }
  func.func @transform_0(%arg0: i32, %arg1: i32) -> (i32, i32, i32) {
    %c0_i32 = arith.constant 0 : i32
    %c0_i32_0 = arith.constant 0 : i32
    %c0_i32_1 = arith.constant 0 : i32
    return %c0_i32, %c0_i32_0, %arg0 : i32, i32, i32
  }
  func.func @transform_1(%arg0: i32, %arg1: i32) -> (i32, i32) {
    %c0_i32 = arith.constant 0 : i32
    %c0_i32_0 = arith.constant 0 : i32
    %c0_i32_1 = arith.constant 0 : i32
    return %c0_i32, %c0_i32_0 : i32, i32
  }
  func.func @transform_2(%arg0: i32, %arg1: i32) -> (i32, i32) {
    %c0_i32 = arith.constant 0 : i32
    %c0_i32_0 = arith.constant 0 : i32
    %c0_i32_1 = arith.constant 0 : i32
    return %c0_i32, %c0_i32_0 : i32, i32
  }
  func.func @transform_3(%arg0: i32, %arg1: i32) -> (i32, i32, i32) {
    %c0_i32 = arith.constant 0 : i32
    %c0_i32_0 = arith.constant 0 : i32
    %c0_i32_1 = arith.constant 0 : i32
    return %arg0, %c0_i32, %c0_i32_0 : i32, i32, i32
  }
}

</mosaic_0001>

<llo_original>
// kernel: tpu_custom_call.1
$region0: #{tpu_custom_call.1}
  #allocation0 [shape = 'u32[]', space=smem, size = 0x4, offset = 0x4, fixed_abs, tag = 'smem constant byte address 0x4 - core index']
  #allocation1 [shape = 'u32[144,128]{1,0:T(1,128)}', space=vmem, size = 0x12000, scoped, tag = 'internal scratch']
  #allocation2 [shape = 'f32[2,64,128]{2,1,0:T(8,128)}', space=vmem, size = 0x10000, scoped, tag = 'scratch operand']
  %s0 = inlined_call_operand.hbm [shape: f32[1,128,128], index: 0, kind: input, shape index: {}]
  %s1 = inlined_call_operand.hbm [shape: f32[64,128], index: 1, kind: input, shape index: {}]
  %s2 = inlined_call_operand.hbm [shape: f32[64,128], index: 2, kind: input, shape index: {}]
  %s3 = inlined_call_operand.hbm [shape: f32[2,64,128], index: 3, kind: output, shape index: {}]
  %s4 = sld [smem:[#allocation0]]
  $region42: #{tpu_custom_call.1} parent=0
    _
  %s6 = ssub.s32 1, %s4
  %s7 = scalar_select 0, %s6, %s4
  $region1: #{tpu_custom_call.1} parent=0
    #allocation3 [shape = 'u8[65536]{0}', space=vmem, size = 0x10000, scoped, tag = 'input window, operand 0, single buffered']
    #allocation4 [shape = 's32[1]{0}', space=sflag, size = 0x4, scoped, tag = 'scoped memory for tpu_custom_call.1']
    #allocation5 [shape = 's32[1]{0}', space=sflag, size = 0x4, scoped, tag = 'scoped memory for tpu_custom_call.1']
    #allocation6 [shape = 'u8[32768]{0}', space=vmem, size = 0x8000, scoped, tag = 'input window, operand 1, single buffered']
    #allocation7 [shape = 's32[1]{0}', space=sflag, size = 0x4, scoped, tag = 'scoped memory for tpu_custom_call.1']
    #allocation8 [shape = 'u8[32768]{0}', space=vmem, size = 0x8000, scoped, tag = 'input window, operand 2, single buffered']
    #allocation9 [shape = 'u8[65536]{0}', space=vmem, size = 0x10000, scoped, tag = 'output window, operand 0, single buffered']
    %8 = vsyncpa [#allocation4], 0
    %9 = vsyncpa [#allocation7], 0
    %10 = vsyncpa [#allocation5], 0
    // Predicated region
    $region2: #{tpu_custom_call.1} parent=1 // pred_check
      _
    $region3: #{tpu_custom_call.1} parent=1 // pred_check_branch
      %12 = sbr.rel (0) target = $region5
    $region4: #{tpu_custom_call.1} parent=1 // pred_region
      %s14 = ssub.s32 2048, 2048
      %15 = vsyncadd [#allocation4], %s14
      %s16 = sshll.u32 [#allocation3], 4
      %s17 = int_to_ptr.vmem [resolvable:$true] %s16
      %22 = dma.hbm_to_vmem [thread:$0]  %s0, 2048, %s17, [#allocation4], 128, 128, 8
    $region5: #{tpu_custom_call.1} parent=1 // pred_fallthru
      _
    // Predicated region
    $region6: #{tpu_custom_call.1} parent=1 // pred_check
      _
    $region7: #{tpu_custom_call.1} parent=1 // pred_check_branch
      %24 = sbr.rel (0) target = $region9
    $region8: #{tpu_custom_call.1} parent=1 // pred_region
      %s26 = ssub.s32 1024, 1024
      %27 = vsyncadd [#allocation7], %s26
      %s28 = sshll.u32 [#allocation6], 4
      %s29 = int_to_ptr.vmem [resolvable:$true] %s28
      %34 = dma.hbm_to_vmem [thread:$0]  %s1, 1024, %s29, [#allocation7], 128, 128, 8
    $region9: #{tpu_custom_call.1} parent=1 // pred_fallthru
      _
    // Predicated region
    $region10: #{tpu_custom_call.1} parent=1 // pred_check
      _
    $region11: #{tpu_custom_call.1} parent=1 // pred_check_branch
      %36 = sbr.rel (0) target = $region13
    $region12: #{tpu_custom_call.1} parent=1 // pred_region
      %s38 = ssub.s32 1024, 1024
      %39 = vsyncadd [#allocation7], %s38
      %s40 = sshll.u32 [#allocation8], 4
      %s41 = int_to_ptr.vmem [resolvable:$true] %s40
      %46 = dma.hbm_to_vmem [thread:$0]  %s2, 1024, %s41, [#allocation7], 128, 128, 8
    $region13: #{tpu_custom_call.1} parent=1 // pred_fallthru
      _
    // Predicated region
    $region14: #{tpu_custom_call.1} parent=1 // pred_check
      _
    $region15: #{tpu_custom_call.1} parent=1 // pred_check_branch
      %48 = sbr.rel (0) target = $region17
    $region16: #{tpu_custom_call.1} parent=1 // pred_region
      %49 = dma.done [#allocation4], 2048
    $region17: #{tpu_custom_call.1} parent=1 // pred_fallthru
      _
    // Predicated region
    $region18: #{tpu_custom_call.1} parent=1 // pred_check
      _
    $region19: #{tpu_custom_call.1} parent=1 // pred_check_branch
      %51 = sbr.rel (0) target = $region21
    $region20: #{tpu_custom_call.1} parent=1 // pred_region
      %52 = dma.done [#allocation7], 1024
    $region21: #{tpu_custom_call.1} parent=1 // pred_fallthru
      _
    // Predicated region
    $region22: #{tpu_custom_call.1} parent=1 // pred_check
      _
    $region23: #{tpu_custom_call.1} parent=1 // pred_check_branch
      %54 = sbr.rel (0) target = $region25
    $region24: #{tpu_custom_call.1} parent=1 // pred_region
      %55 = dma.done [#allocation7], 1024
    $region25: #{tpu_custom_call.1} parent=1 // pred_fallthru
      _
    %p57 = scmp.eq.s32.totalorder 0, 0
    // Predicated region
    $region26: #{tpu_custom_call.1} parent=1 // pred_check
      %p58 = pneg %p57
    $region27: #{tpu_custom_call.1} parent=1 // pred_check_branch
      %60 = sbr.rel (%p58) target = $region29
    $region28: #{tpu_custom_call.1} parent=1 // pred_region
      %61 = vst [vmem:[#allocation2] sm:$0xff] 0.0
      %62 = vst [vmem:[#allocation2 + $0x8] sm:$0xff] 0.0
      %63 = vst [vmem:[#allocation2 + $0x10] sm:$0xff] 0.0
      %64 = vst [vmem:[#allocation2 + $0x18] sm:$0xff] 0.0
      %65 = vst [vmem:[#allocation2 + $0x20] sm:$0xff] 0.0
      %66 = vst [vmem:[#allocation2 + $0x28] sm:$0xff] 0.0
      %67 = vst [vmem:[#allocation2 + $0x30] sm:$0xff] 0.0
      %68 = vst [vmem:[#allocation2 + $0x38] sm:$0xff] 0.0
      %69 = vst [vmem:[#allocation2 + $0x40] sm:$0xff] 0.0
      %70 = vst [vmem:[#allocation2 + $0x48] sm:$0xff] 0.0
      %71 = vst [vmem:[#allocation2 + $0x50] sm:$0xff] 0.0
      %72 = vst [vmem:[#allocation2 + $0x58] sm:$0xff] 0.0
      %73 = vst [vmem:[#allocation2 + $0x60] sm:$0xff] 0.0
      %74 = vst [vmem:[#allocation2 + $0x68] sm:$0xff] 0.0
      %75 = vst [vmem:[#allocation2 + $0x70] sm:$0xff] 0.0
      %76 = vst [vmem:[#allocation2 + $0x78] sm:$0xff] 0.0
    $region29: #{tpu_custom_call.1} parent=1 // pred_fallthru
      _
    %v77 = vld [vmem:[#allocation3] sm:$0xff]
    %v78 = vld [vmem:[#allocation3 + $0x8] sm:$0xff]
    %v79 = vld [vmem:[#allocation3 + $0x10] sm:$0xff]
    %v80 = vld [vmem:[#allocation3 + $0x18] sm:$0xff]
    %v81 = vld [vmem:[#allocation3 + $0x20] sm:$0xff]
    %v82 = vld [vmem:[#allocation3 + $0x28] sm:$0xff]
    %v83 = vld [vmem:[#allocation3 + $0x30] sm:$0xff]
    %v84 = vld [vmem:[#allocation3 + $0x38] sm:$0xff]
    %v85 = vld [vmem:[#allocation3 + $0x40] sm:$0xff]
    %v86 = vld [vmem:[#allocation3 + $0x48] sm:$0xff]
    %v87 = vld [vmem:[#allocation3 + $0x50] sm:$0xff]
    %v88 = vld [vmem:[#allocation3 + $0x58] sm:$0xff]
    %v89 = vld [vmem:[#allocation3 + $0x60] sm:$0xff]
    %v90 = vld [vmem:[#allocation3 + $0x68] sm:$0xff]
    %v91 = vld [vmem:[#allocation3 + $0x70] sm:$0xff]
    %v92 = vld [vmem:[#allocation3 + $0x78] sm:$0xff]
    %v93 = vmul.f32 %v77, %v77
    %v94 = vmul.f32 %v78, %v78
    %v95 = vmul.f32 %v79, %v79
    %v96 = vmul.f32 %v80, %v80
    %v97 = vmul.f32 %v81, %v81
    %v98 = vmul.f32 %v82, %v82
    %v99 = vmul.f32 %v83, %v83
    %v100 = vmul.f32 %v84, %v84
    %v101 = vmul.f32 %v85, %v85
    %v102 = vmul.f32 %v86, %v86
    %v103 = vmul.f32 %v87, %v87
    %v104 = vmul.f32 %v88, %v88
    %v105 = vmul.f32 %v89, %v89
    %v106 = vmul.f32 %v90, %v90
    %v107 = vmul.f32 %v91, %v91
    %v108 = vmul.f32 %v92, %v92
    %v109 = vadd.f32 %v93, %v94
    %v110 = vadd.f32 %v109, %v95
    %v111 = vadd.f32 %v110, %v96
    %v112 = vadd.f32 %v111, %v97
    %v113 = vadd.f32 %v112, %v98
    %v114 = vadd.f32 %v113, %v99
    %v115 = vadd.f32 %v114, %v100
    %v116 = vadd.f32 %v115, %v101
    %v117 = vadd.f32 %v116, %v102
    %v118 = vadd.f32 %v117, %v103
    %v119 = vadd.f32 %v118, %v104
    %v120 = vadd.f32 %v119, %v105
    %v121 = vadd.f32 %v120, %v106
    %v122 = vadd.f32 %v121, %v107
    %v123 = vadd.f32 %v122, %v108
    %v124 = vrot.slane %v123, 4
    %v125 = vadd.f32 %v123, %v124
    %v126 = vrot.slane %v125, 2
    %v127 = vadd.f32 %v125, %v126
    %v128 = vrot.slane %v127, 1
    %v129 = vadd.f32 %v127, %v128
    %v130 = vmax.f32 %v129, 1e-24
    %v131 = vrsqrt.pop %v130
    %v132 = vmul.f32 %v77, %v131
    %v133 = vmul.f32 %v78, %v131
    %v134 = vmul.f32 %v79, %v131
    %v135 = vmul.f32 %v80, %v131
    %v136 = vmul.f32 %v81, %v131
    %v137 = vmul.f32 %v82, %v131
    %v138 = vmul.f32 %v83, %v131
    %v139 = vmul.f32 %v84, %v131
    %v140 = vmul.f32 %v85, %v131
    %v141 = vmul.f32 %v86, %v131
    %v142 = vmul.f32 %v87, %v131
    %v143 = vmul.f32 %v88, %v131
    %v144 = vmul.f32 %v89, %v131
    %v145 = vmul.f32 %v90, %v131
    %v146 = vmul.f32 %v91, %v131
    %v147 = vmul.f32 %v92, %v131
    %v148 = vpack.c.bf16 %v133, %v132
    %v149 = vpack.c.bf16 %v135, %v134
    %v150 = vpack.c.bf16 %v137, %v136
    %v151 = vpack.c.bf16 %v139, %v138
    %v152 = vpack.c.bf16 %v141, %v140
    %v153 = vpack.c.bf16 %v143, %v142
    %v154 = vpack.c.bf16 %v145, %v144
    %v155 = vpack.c.bf16 %v147, %v146
    %v156 = vld [vmem:[#allocation6] sm:$0xff]
    %v157 = vld [vmem:[#allocation6 + $0x8] sm:$0xff]
    %v158 = vld [vmem:[#allocation6 + $0x10] sm:$0xff]
    %v159 = vld [vmem:[#allocation6 + $0x18] sm:$0xff]
    %v160 = vld [vmem:[#allocation6 + $0x20] sm:$0xff]
    %v161 = vld [vmem:[#allocation6 + $0x28] sm:$0xff]
    %v162 = vld [vmem:[#allocation6 + $0x30] sm:$0xff]
    %v163 = vld [vmem:[#allocation6 + $0x38] sm:$0xff]
    %v164 = vpack.c.bf16 %v157, %v156
    %v165 = vpack.c.bf16 %v159, %v158
    %v166 = vpack.c.bf16 %v161, %v160
    %v167 = vpack.c.bf16 %v163, %v162
    %168 = vmatprep.subr.bf16.mxu0 0
    %169 = vmatpush1.bf16.msra.mxu0 %v148
    %170 = vmatprep.subr.bf16.mxu0 0
    %171 = vmatpush1.bf16.msra.mxu0 %v149
    %172 = vmatprep.subr.bf16.mxu0 0
    %173 = vmatpush1.bf16.msra.mxu0 %v150
    %174 = vmatprep.subr.bf16.mxu0 0
    %175 = vmatpush1.bf16.msra.mxu0 %v151
    %176 = vmatprep.subr.bf16.mxu0 0
    %177 = vmatpush1.bf16.msra.mxu0 %v152
    %178 = vmatprep.subr.bf16.mxu0 0
    %179 = vmatpush1.bf16.msra.mxu0 %v153
    %180 = vmatprep.subr.bf16.mxu0 0
    %181 = vmatpush1.bf16.msra.mxu0 %v154
    %182 = vmatprep.subr.bf16.mxu0 0
    %183 = vmatpush1.bf16.msra.mxu0 %v155
    %184 = vmatprep.subr.bf16.mxu0 0
    %185 = vmatpush1.bf16.msra.mxu0 0
    %186 = vmatprep.subr.bf16.mxu0 0
    %187 = vmatpush1.bf16.msra.mxu0 0
    %188 = vmatprep.subr.bf16.mxu0 0
    %189 = vmatpush1.bf16.msra.mxu0 0
    %190 = vmatprep.subr.bf16.mxu0 0
    %191 = vmatpush1.bf16.msra.mxu0 0
    %192 = vmatprep.subr.bf16.mxu0 0
    %193 = vmatpush1.bf16.msra.mxu0 0
    %194 = vmatprep.subr.bf16.mxu0 0
    %195 = vmatpush1.bf16.msra.mxu0 0
    %196 = vmatprep.subr.bf16.mxu0 0
    %197 = vmatpush1.bf16.msra.mxu0 0
    %198 = vmatprep.subr.bf16.mxu0 0
    %199 = vmatpush1.bf16.msra.mxu0 0
    %200 = vmatprep.mubr.bf16.mxu0 0
    %201 = vmatmul.mubr.bf16.gmra.mrb[0].mxu0 %v164
    %v202 = vpop.f32.mrb[0].mxu0
    %v203 = vadd.f32 0.0, %v202
    %v204 = vpop.f32.mrb[0].mxu0
    %v205 = vpop.f32.mrb[0].mxu0
    %v206 = vadd.f32 0.0, %v205
    %v207 = vpop.f32.mrb[0].mxu0
    %208 = vmatprep.mubr.bf16.mxu0 0
    %209 = vmatmul.mubr.bf16.gmra.mrb[0].mxu0 %v165
    %v210 = vpop.f32.mrb[0].mxu0
    %v211 = vadd.f32 0.0, %v210
    %v212 = vpop.f32.mrb[0].mxu0
    %v213 = vpop.f32.mrb[0].mxu0
    %v214 = vadd.f32 0.0, %v213
    %v215 = vpop.f32.mrb[0].mxu0
    %216 = vmatprep.mubr.bf16.mxu0 0
    %217 = vmatmul.mubr.bf16.gmra.mrb[0].mxu0 %v166
    %v218 = vpop.f32.mrb[0].mxu0
    %v219 = vadd.f32 0.0, %v218
    %v220 = vpop.f32.mrb[0].mxu0
    %v221 = vpop.f32.mrb[0].mxu0
    %v222 = vadd.f32 0.0, %v221
    %v223 = vpop.f32.mrb[0].mxu0
    %224 = vmatprep.mubr.bf16.mxu0 0
    %225 = vmatmul.mubr.bf16.gmra.mrb[0].mxu0 %v167
    %v226 = vpop.f32.mrb[0].mxu0
    %v227 = vadd.f32 0.0, %v226
    %v228 = vpop.f32.mrb[0].mxu0
    %v229 = vpop.f32.mrb[0].mxu0
    %v230 = vadd.f32 0.0, %v229
    %v231 = vpop.f32.mrb[0].mxu0
    %232 = vdwg.mxu0
    %v233 = vmax.f32 %v203, %v219
    %v234 = vmax.f32 %v206, %v222
    %v235 = vmax.f32 %v211, %v227
    %v236 = vmax.f32 %v214, %v230
    %v237 = vmax.f32 %v233, %v234
    %v238 = vmax.f32 %v235, %v236
    %v239 = vmax.f32 %v237, %v238
    %v240 = vrot.slane %v239, 4
    %v241 = vmax.f32 %v239, %v240
    %v242 = vrot.slane %v241, 2
    %v243 = vmax.f32 %v241, %v242
    %v244 = vrot.slane %v243, 1
    %v245 = vmax.f32 %v243, %v244
    %v246 = vsub.f32 %v203, %v245
    %v247 = vsub.f32 %v206, %v245
    %v248 = vsub.f32 %v211, %v245
    %v249 = vsub.f32 %v214, %v245
    %v250 = vsub.f32 %v219, %v245
    %v251 = vsub.f32 %v222, %v245
    %v252 = vsub.f32 %v227, %v245
    %v253 = vsub.f32 %v230, %v245
    %v254 = vmul.f32 %v246, 1.442695
    %v255 = vpow.pop %v254
    %v256 = vmul.f32 %v247, 1.442695
    %v257 = vpow.pop %v256
    %v258 = vmul.f32 %v248, 1.442695
    %v259 = vpow.pop %v258
    %v260 = vmul.f32 %v249, 1.442695
    %v261 = vpow.pop %v260
    %v262 = vmul.f32 %v250, 1.442695
    %v263 = vpow.pop %v262
    %v264 = vmul.f32 %v251, 1.442695
    %v265 = vpow.pop %v264
    %v266 = vmul.f32 %v252, 1.442695
    %v267 = vpow.pop %v266
    %v268 = vmul.f32 %v253, 1.442695
    %v269 = vpow.pop %v268
    %v270 = vadd.f32 %v255, %v257
    %v271 = vadd.f32 %v270, %v259
    %v272 = vadd.f32 %v271, %v261
    %v273 = vadd.f32 %v272, %v263
    %v274 = vadd.f32 %v273, %v265
    %v275 = vadd.f32 %v274, %v267
    %v276 = vadd.f32 %v275, %v269
    %v277 = vrot.slane %v276, 4
    %v278 = vadd.f32 %v276, %v277
    %v279 = vrot.slane %v278, 2
    %v280 = vadd.f32 %v278, %v279
    %v281 = vrot.slane %v280, 1
    %v282 = vadd.f32 %v280, %v281
    %v283 = vrcp.pop %v282
    %v284 = vmul.f32 %v255, %v283
    %v285 = vmul.f32 %v257, %v283
    %v286 = vmul.f32 %v259, %v283
    %v287 = vmul.f32 %v261, %v283
    %v288 = vmul.f32 %v263, %v283
    %v289 = vmul.f32 %v265, %v283
    %v290 = vmul.f32 %v267, %v283
    %v291 = vmul.f32 %v269, %v283
    %v292 = vld [vmem:[#allocation8] sm:$0xff]
    %v293 = vld [vmem:[#allocation8 + $0x8] sm:$0xff]
    %v294 = vld [vmem:[#allocation8 + $0x10] sm:$0xff]
    %v295 = vld [vmem:[#allocation8 + $0x18] sm:$0xff]
    %v296 = vld [vmem:[#allocation8 + $0x20] sm:$0xff]
    %v297 = vld [vmem:[#allocation8 + $0x28] sm:$0xff]
    %v298 = vld [vmem:[#allocation8 + $0x30] sm:$0xff]
    %v299 = vld [vmem:[#allocation8 + $0x38] sm:$0xff]
    %v300 = vpack.c.bf16 %v285, %v284
    %v301 = vpack.c.bf16 %v287, %v286
    %v302 = vpack.c.bf16 %v289, %v288
    %v303 = vpack.c.bf16 %v291, %v290
    %vm304 = vcmask 523264
    %v306 = vsel %vm304, %v300, 0
    %v309 = vsel %vm304, %v301, 0
    %v312 = vsel %vm304, %v302, 0
    %v315 = vsel %vm304, %v303, 0
    %v318 = vsel %vm304, %v148, 0
    %v321 = vsel %vm304, %v149, 0
    %v324 = vsel %vm304, %v150, 0
    %v327 = vsel %vm304, %v151, 0
    %v330 = vsel %vm304, %v152, 0
    %v333 = vsel %vm304, %v153, 0
    %v336 = vsel %vm304, %v154, 0
    %v339 = vsel %vm304, %v155, 0
    %341 = vmatprep.subr.bf16.mxu0 0
    %342 = vmatpush1.bf16.xpose.msra.mxu0 %v318
    %343 = vmatprep.subr.bf16.mxu0 0
    %344 = vmatpush1.bf16.xpose.msra.mxu0 %v321
    %345 = vmatprep.subr.bf16.mxu0 0
    %346 = vmatpush1.bf16.xpose.msra.mxu0 %v324
    %347 = vmatprep.subr.bf16.mxu0 0
    %348 = vmatpush1.bf16.xpose.msra.mxu0 %v327
    %349 = vmatprep.subr.bf16.mxu0 0
    %350 = vmatpush1.bf16.xpose.msra.mxu0 %v330
    %351 = vmatprep.subr.bf16.mxu0 0
    %352 = vmatpush1.bf16.xpose.msra.mxu0 %v333
    %353 = vmatprep.subr.bf16.mxu0 0
    %354 = vmatpush1.bf16.xpose.msra.mxu0 %v336
    %355 = vmatprep.subr.bf16.mxu0 0
    %356 = vmatpush1.bf16.xpose.msra.mxu0 %v339
    %357 = vmatprep.subr.bf16.mxu0 0
    %358 = vmatpush1.bf16.xpose.msra.mxu0 0
    %359 = vmatprep.subr.bf16.mxu0 0
    %360 = vmatpush1.bf16.xpose.msra.mxu0 0
    %361 = vmatprep.subr.bf16.mxu0 0
    %362 = vmatpush1.bf16.xpose.msra.mxu0 0
    %363 = vmatprep.subr.bf16.mxu0 0
    %364 = vmatpush1.bf16.xpose.msra.mxu0 0
    %365 = vmatprep.subr.bf16.mxu0 0
    %366 = vmatpush1.bf16.xpose.msra.mxu0 0
    %367 = vmatprep.subr.bf16.mxu0 0
    %368 = vmatpush1.bf16.xpose.msra.mxu0 0
    %369 = vmatprep.subr.bf16.mxu0 0
    %370 = vmatpush1.bf16.xpose.msra.mxu0 0
    %371 = vmatprep.subr.bf16.mxu0 0
    %372 = vmatpush1.bf16.xpose.msra.mxu0 0
    %373 = vmatprep.mubr.bf16.mxu0 0
    %374 = vmatmul.mubr.bf16.gmra.mrb[0].mxu0 %v306
    %v375 = vpop.f32.mrb[0].mxu0
    %v376 = vadd.f32 0.0, %v375
    %v377 = vpop.f32.mrb[0].mxu0
    %v378 = vpop.f32.mrb[0].mxu0
    %v379 = vadd.f32 0.0, %v378
    %v380 = vpop.f32.mrb[0].mxu0
    %381 = vmatprep.mubr.bf16.mxu0 0
    %382 = vmatmul.mubr.bf16.gmra.mrb[0].mxu0 %v309
    %v383 = vpop.f32.mrb[0].mxu0
    %v384 = vadd.f32 0.0, %v383
    %v385 = vpop.f32.mrb[0].mxu0
    %v386 = vpop.f32.mrb[0].mxu0
    %v387 = vadd.f32 0.0, %v386
    %v388 = vpop.f32.mrb[0].mxu0
    %389 = vmatprep.mubr.bf16.mxu0 0
    %390 = vmatmul.mubr.bf16.gmra.mrb[0].mxu0 %v312
    %v391 = vpop.f32.mrb[0].mxu0
    %v392 = vadd.f32 0.0, %v391
    %v393 = vpop.f32.mrb[0].mxu0
    %v394 = vpop.f32.mrb[0].mxu0
    %v395 = vadd.f32 0.0, %v394
    %v396 = vpop.f32.mrb[0].mxu0
    %397 = vmatprep.mubr.bf16.mxu0 0
    %398 = vmatmul.mubr.bf16.gmra.mrb[0].mxu0 %v315
    %v399 = vpop.f32.mrb[0].mxu0
    %v400 = vadd.f32 0.0, %v399
    %v401 = vpop.f32.mrb[0].mxu0
    %v402 = vpop.f32.mrb[0].mxu0
    %v403 = vadd.f32 0.0, %v402
    %v404 = vpop.f32.mrb[0].mxu0
    %405 = vdwg.mxu0
    %v406 = vsel %vm304, %v284, 0.0
    %407 = vadd.xlane.f32.xlu0 %v406
    %v408 = vpop.xlane.xlu0 %407
    %v409 = vsel %vm304, %v285, 0.0
    %410 = vadd.xlane.f32.xlu0 %v409
    %v411 = vpop.xlane.xlu0 %410
    %v412 = vsel %vm304, %v286, 0.0
    %413 = vadd.xlane.f32.xlu0 %v412
    %v414 = vpop.xlane.xlu0 %413
    %v415 = vsel %vm304, %v287, 0.0
    %416 = vadd.xlane.f32.xlu0 %v415
    %v417 = vpop.xlane.xlu0 %416
    %v418 = vsel %vm304, %v288, 0.0
    %419 = vadd.xlane.f32.xlu0 %v418
    %v420 = vpop.xlane.xlu0 %419
    %v421 = vsel %vm304, %v289, 0.0
    %422 = vadd.xlane.f32.xlu0 %v421
    %v423 = vpop.xlane.xlu0 %422
    %v424 = vsel %vm304, %v290, 0.0
    %425 = vadd.xlane.f32.xlu0 %v424
    %v426 = vpop.xlane.xlu0 %425
    %v427 = vsel %vm304, %v291, 0.0
    %428 = vadd.xlane.f32.xlu0 %v427
    %v429 = vpop.xlane.xlu0 %428
    %v430 = vld [vmem:[#allocation2] sm:$0xff]
    %v431 = vld [vmem:[#allocation2 + $0x8] sm:$0xff]
    %v432 = vld [vmem:[#allocation2 + $0x10] sm:$0xff]
    %v433 = vld [vmem:[#allocation2 + $0x18] sm:$0xff]
    %v434 = vld [vmem:[#allocation2 + $0x20] sm:$0xff]
    %v435 = vld [vmem:[#allocation2 + $0x28] sm:$0xff]
    %v436 = vld [vmem:[#allocation2 + $0x30] sm:$0xff]
    %v437 = vld [vmem:[#allocation2 + $0x38] sm:$0xff]
    %v438 = vmul.f32 %v408, %v292
    %v439 = vmul.f32 %v411, %v293
    %v440 = vmul.f32 %v414, %v294
    %v441 = vmul.f32 %v417, %v295
    %v442 = vmul.f32 %v420, %v296
    %v443 = vmul.f32 %v423, %v297
    %v444 = vmul.f32 %v426, %v298
    %v445 = vmul.f32 %v429, %v299
    %v446 = vsub.f32 %v376, %v438
    %v447 = vsub.f32 %v379, %v439
    %v448 = vsub.f32 %v384, %v440
    %v449 = vsub.f32 %v387, %v441
    %v450 = vsub.f32 %v392, %v442
    %v451 = vsub.f32 %v395, %v443
    %v452 = vsub.f32 %v400, %v444
    %v453 = vsub.f32 %v403, %v445
    %v454 = vadd.f32 %v430, %v446
    %v455 = vadd.f32 %v431, %v447
    %v456 = vadd.f32 %v432, %v448
    %v457 = vadd.f32 %v433, %v449
    %v458 = vadd.f32 %v434, %v450
    %v459 = vadd.f32 %v435, %v451
    %v460 = vadd.f32 %v436, %v452
    %v461 = vadd.f32 %v437, %v453
    %462 = vst [vmem:[#allocation2] sm:$0xff] %v454
    %463 = vst [vmem:[#allocation2 + $0x8] sm:$0xff] %v455
    %464 = vst [vmem:[#allocation2 + $0x10] sm:$0xff] %v456
    %465 = vst [vmem:[#allocation2 + $0x18] sm:$0xff] %v457
    %466 = vst [vmem:[#allocation2 + $0x20] sm:$0xff] %v458
    %467 = vst [vmem:[#allocation2 + $0x28] sm:$0xff] %v459
    %468 = vst [vmem:[#allocation2 + $0x30] sm:$0xff] %v460
    %469 = vst [vmem:[#allocation2 + $0x38] sm:$0xff] %v461
    %474 = vrot.lane.b32.xlu0 %v300, 64
    %v475 = vpop.permute.xlu0 %474
    %476 = vrot.lane.b32.xlu0 %v301, 64
    %v477 = vpop.permute.xlu0 %476
    %478 = vrot.lane.b32.xlu0 %v302, 64
    %v479 = vpop.permute.xlu0 %478
    %480 = vrot.lane.b32.xlu0 %v303, 64
    %v481 = vpop.permute.xlu0 %480
    %490 = vrot.lane.b32.xlu0 %v148, 64
    %v491 = vpop.permute.xlu0 %490
    %492 = vrot.lane.b32.xlu0 %v149, 64
    %v493 = vpop.permute.xlu0 %492
    %494 = vrot.lane.b32.xlu0 %v150, 64
    %v495 = vpop.permute.xlu0 %494
    %496 = vrot.lane.b32.xlu0 %v151, 64
    %v497 = vpop.permute.xlu0 %496
    %498 = vrot.lane.b32.xlu0 %v152, 64
    %v499 = vpop.permute.xlu0 %498
    %500 = vrot.lane.b32.xlu0 %v153, 64
    %v501 = vpop.permute.xlu0 %500
    %502 = vrot.lane.b32.xlu0 %v154, 64
    %v503 = vpop.permute.xlu0 %502
    %504 = vrot.lane.b32.xlu0 %v155, 64
    %v505 = vpop.permute.xlu0 %504
    %v507 = vsel %vm304, %v475, 0
    %v510 = vsel %vm304, %v477, 0
    %v513 = vsel %vm304, %v479, 0
    %v516 = vsel %vm304, %v481, 0
    %v519 = vsel %vm304, %v491, 0
    %v522 = vsel %vm304, %v493, 0
    %v525 = vsel %vm304, %v495, 0
    %v528 = vsel %vm304, %v497, 0
    %v531 = vsel %vm304, %v499, 0
    %v534 = vsel %vm304, %v501, 0
    %v537 = vsel %vm304, %v503, 0
    %v540 = vsel %vm304, %v505, 0
    %542 = vmatprep.subr.bf16.mxu0 0
    %543 = vmatpush1.bf16.xpose.msra.mxu0 %v519
    %544 = vmatprep.subr.bf16.mxu0 0
    %545 = vmatpush1.bf16.xpose.msra.mxu0 %v522
    %546 = vmatprep.subr.bf16.mxu0 0
    %547 = vmatpush1.bf16.xpose.msra.mxu0 %v525
    %548 = vmatprep.subr.bf16.mxu0 0
    %549 = vmatpush1.bf16.xpose.msra.mxu0 %v528
    %550 = vmatprep.subr.bf16.mxu0 0
    %551 = vmatpush1.bf16.xpose.msra.mxu0 %v531
    %552 = vmatprep.subr.bf16.mxu0 0
    %553 = vmatpush1.bf16.xpose.msra.mxu0 %v534
    %554 = vmatprep.subr.bf16.mxu0 0
    %555 = vmatpush1.bf16.xpose.msra.mxu0 %v537
    %556 = vmatprep.subr.bf16.mxu0 0
    %557 = vmatpush1.bf16.xpose.msra.mxu0 %v540
    %558 = vmatprep.subr.bf16.mxu0 0
    %559 = vmatpush1.bf16.xpose.msra.mxu0 0
    %560 = vmatprep.subr.bf16.mxu0 0
    %561 = vmatpush1.bf16.xpose.msra.mxu0 0
    %562 = vmatprep.subr.bf16.mxu0 0
    %563 = vmatpush1.bf16.xpose.msra.mxu0 0
    %564 = vmatprep.subr.bf16.mxu0 0
    %565 = vmatpush1.bf16.xpose.msra.mxu0 0
    %566 = vmatprep.subr.bf16.mxu0 0
    %567 = vmatpush1.bf16.xpose.msra.mxu0 0
    %568 = vmatprep.subr.bf16.mxu0 0
    %569 = vmatpush1.bf16.xpose.msra.mxu0 0
    %570 = vmatprep.subr.bf16.mxu0 0
    %571 = vmatpush1.bf16.xpose.msra.mxu0 0
    %572 = vmatprep.subr.bf16.mxu0 0
    %573 = vmatpush1.bf16.xpose.msra.mxu0 0
    %574 = vmatprep.mubr.bf16.mxu0 0
    %575 = vmatmul.mubr.bf16.gmra.mrb[0].mxu0 %v507
    %v576 = vpop.f32.mrb[0].mxu0
    %v577 = vadd.f32 0.0, %v576
    %v578 = vpop.f32.mrb[0].mxu0
    %v579 = vpop.f32.mrb[0].mxu0
    %v580 = vadd.f32 0.0, %v579
    %v581 = vpop.f32.mrb[0].mxu0
    %582 = vmatprep.mubr.bf16.mxu0 0
    %583 = vmatmul.mubr.bf16.gmra.mrb[0].mxu0 %v510
    %v584 = vpop.f32.mrb[0].mxu0
    %v585 = vadd.f32 0.0, %v584
    %v586 = vpop.f32.mrb[0].mxu0
    %v587 = vpop.f32.mrb[0].mxu0
    %v588 = vadd.f32 0.0, %v587
    %v589 = vpop.f32.mrb[0].mxu0
    %590 = vmatprep.mubr.bf16.mxu0 0
    %591 = vmatmul.mubr.bf16.gmra.mrb[0].mxu0 %v513
    %v592 = vpop.f32.mrb[0].mxu0
    %v593 = vadd.f32 0.0, %v592
    %v594 = vpop.f32.mrb[0].mxu0
    %v595 = vpop.f32.mrb[0].mxu0
    %v596 = vadd.f32 0.0, %v595
    %v597 = vpop.f32.mrb[0].mxu0
    %598 = vmatprep.mubr.bf16.mxu0 0
    %599 = vmatmul.mubr.bf16.gmra.mrb[0].mxu0 %v516
    %v600 = vpop.f32.mrb[0].mxu0
    %v601 = vadd.f32 0.0, %v600
    %v602 = vpop.f32.mrb[0].mxu0
    %v603 = vpop.f32.mrb[0].mxu0
    %v604 = vadd.f32 0.0, %v603
    %v605 = vpop.f32.mrb[0].mxu0
    %606 = vdwg.mxu0
    %615 = vrot.lane.b32.xlu0 %v284, 64
    %v616 = vpop.permute.xlu0 %615
    %617 = vrot.lane.b32.xlu0 %v285, 64
    %v618 = vpop.permute.xlu0 %617
    %619 = vrot.lane.b32.xlu0 %v286, 64
    %v620 = vpop.permute.xlu0 %619
    %621 = vrot.lane.b32.xlu0 %v287, 64
    %v622 = vpop.permute.xlu0 %621
    %623 = vrot.lane.b32.xlu0 %v288, 64
    %v624 = vpop.permute.xlu0 %623
    %625 = vrot.lane.b32.xlu0 %v289, 64
    %v626 = vpop.permute.xlu0 %625
    %627 = vrot.lane.b32.xlu0 %v290, 64
    %v628 = vpop.permute.xlu0 %627
    %629 = vrot.lane.b32.xlu0 %v291, 64
    %v630 = vpop.permute.xlu0 %629
    %v639 = vsel %vm304, %v616, 0.0
    %640 = vadd.xlane.f32.xlu0 %v639
    %v641 = vpop.xlane.xlu0 %640
    %v642 = vsel %vm304, %v618, 0.0
    %643 = vadd.xlane.f32.xlu0 %v642
    %v644 = vpop.xlane.xlu0 %643
    %v645 = vsel %vm304, %v620, 0.0
    %646 = vadd.xlane.f32.xlu0 %v645
    %v647 = vpop.xlane.xlu0 %646
    %v648 = vsel %vm304, %v622, 0.0
    %649 = vadd.xlane.f32.xlu0 %v648
    %v650 = vpop.xlane.xlu0 %649
    %v651 = vsel %vm304, %v624, 0.0
    %652 = vadd.xlane.f32.xlu0 %v651
    %v653 = vpop.xlane.xlu0 %652
    %v654 = vsel %vm304, %v626, 0.0
    %655 = vadd.xlane.f32.xlu0 %v654
    %v656 = vpop.xlane.xlu0 %655
    %v657 = vsel %vm304, %v628, 0.0
    %658 = vadd.xlane.f32.xlu0 %v657
    %v659 = vpop.xlane.xlu0 %658
    %v660 = vsel %vm304, %v630, 0.0
    %661 = vadd.xlane.f32.xlu0 %v660
    %v662 = vpop.xlane.xlu0 %661
    %s663 = scalar_lea.vmem [#allocation2], 64
    %v664 = vld [vmem:[%s663] sm:$0xff]
    %v665 = vld [vmem:[%s663 + $0x8] sm:$0xff]
    %v666 = vld [vmem:[%s663 + $0x10] sm:$0xff]
    %v667 = vld [vmem:[%s663 + $0x18] sm:$0xff]
    %v668 = vld [vmem:[%s663 + $0x20] sm:$0xff]
    %v669 = vld [vmem:[%s663 + $0x28] sm:$0xff]
    %v670 = vld [vmem:[%s663 + $0x30] sm:$0xff]
    %v671 = vld [vmem:[%s663 + $0x38] sm:$0xff]
    %v672 = vmul.f32 %v641, %v292
    %v673 = vmul.f32 %v644, %v293
    %v674 = vmul.f32 %v647, %v294
    %v675 = vmul.f32 %v650, %v295
    %v676 = vmul.f32 %v653, %v296
    %v677 = vmul.f32 %v656, %v297
    %v678 = vmul.f32 %v659, %v298
    %v679 = vmul.f32 %v662, %v299
    %v680 = vsub.f32 %v577, %v672
    %v681 = vsub.f32 %v580, %v673
    %v682 = vsub.f32 %v585, %v674
    %v683 = vsub.f32 %v588, %v675
    %v684 = vsub.f32 %v593, %v676
    %v685 = vsub.f32 %v596, %v677
    %v686 = vsub.f32 %v601, %v678
    %v687 = vsub.f32 %v604, %v679
    %v688 = vadd.f32 %v664, %v680
    %v689 = vadd.f32 %v665, %v681
    %v690 = vadd.f32 %v666, %v682
    %v691 = vadd.f32 %v667, %v683
    %v692 = vadd.f32 %v668, %v684
    %v693 = vadd.f32 %v669, %v685
    %v694 = vadd.f32 %v670, %v686
    %v695 = vadd.f32 %v671, %v687
    %696 = vst [vmem:[%s663] sm:$0xff] %v688
    %697 = vst [vmem:[%s663 + $0x8] sm:$0xff] %v689
    %698 = vst [vmem:[%s663 + $0x10] sm:$0xff] %v690
    %699 = vst [vmem:[%s663 + $0x18] sm:$0xff] %v691
    %700 = vst [vmem:[%s663 + $0x20] sm:$0xff] %v692
    %701 = vst [vmem:[%s663 + $0x28] sm:$0xff] %v693
    %702 = vst [vmem:[%s663 + $0x30] sm:$0xff] %v694
    %703 = vst [vmem:[%s663 + $0x38] sm:$0xff] %v695
    // Predicated region
    $region30: #{tpu_custom_call.1} parent=1 // pred_check
      %p704 = pneg %p57
    $region31: #{tpu_custom_call.1} parent=1 // pred_check_branch
      %706 = sbr.rel (%p704) target = $region33
    $region32: #{tpu_custom_call.1} parent=1 // pred_region
      %v707 = vld [vmem:[#allocation2] sm:$0xff]
      %v708 = vld [vmem:[#allocation2 + $0x8] sm:$0xff]
      %v709 = vld [vmem:[#allocation2 + $0x10] sm:$0xff]
      %v710 = vld [vmem:[#allocation2 + $0x18] sm:$0xff]
      %v711 = vld [vmem:[#allocation2 + $0x20] sm:$0xff]
      %v712 = vld [vmem:[#allocation2 + $0x28] sm:$0xff]
      %v713 = vld [vmem:[#allocation2 + $0x30] sm:$0xff]
      %v714 = vld [vmem:[#allocation2 + $0x38] sm:$0xff]
      %v715 = vmul.f32 %v707, %v707
      %v716 = vmul.f32 %v708, %v708
      %v717 = vmul.f32 %v709, %v709
      %v718 = vmul.f32 %v710, %v710
      %v719 = vmul.f32 %v711, %v711
      %v720 = vmul.f32 %v712, %v712
      %v721 = vmul.f32 %v713, %v713
      %v722 = vmul.f32 %v714, %v714
      %723 = vadd.xlane.f32.xlu0 %v715
      %v724 = vpop.xlane.xlu0 %723
      %725 = vadd.xlane.f32.xlu0 %v716
      %v726 = vpop.xlane.xlu0 %725
      %727 = vadd.xlane.f32.xlu0 %v717
      %v728 = vpop.xlane.xlu0 %727
      %729 = vadd.xlane.f32.xlu0 %v718
      %v730 = vpop.xlane.xlu0 %729
      %731 = vadd.xlane.f32.xlu0 %v719
      %v732 = vpop.xlane.xlu0 %731
      %733 = vadd.xlane.f32.xlu0 %v720
      %v734 = vpop.xlane.xlu0 %733
      %735 = vadd.xlane.f32.xlu0 %v721
      %v736 = vpop.xlane.xlu0 %735
      %737 = vadd.xlane.f32.xlu0 %v722
      %v738 = vpop.xlane.xlu0 %737
      %v739 = vmax.f32 %v724, 1e-24
      %v740 = vmax.f32 %v726, 1e-24
      %v741 = vmax.f32 %v728, 1e-24
      %v742 = vmax.f32 %v730, 1e-24
      %v743 = vmax.f32 %v732, 1e-24
      %v744 = vmax.f32 %v734, 1e-24
      %v745 = vmax.f32 %v736, 1e-24
      %v746 = vmax.f32 %v738, 1e-24
      %v747 = vrsqrt.pop %v739
      %v748 = vrsqrt.pop %v740
      %v749 = vrsqrt.pop %v741
      %v750 = vrsqrt.pop %v742
      %v751 = vrsqrt.pop %v743
      %v752 = vrsqrt.pop %v744
      %v753 = vrsqrt.pop %v745
      %v754 = vrsqrt.pop %v746
      %v755 = vmul.f32 %v707, %v747
      %v756 = vmul.f32 %v708, %v748
      %v757 = vmul.f32 %v709, %v749
      %v758 = vmul.f32 %v710, %v750
      %v759 = vmul.f32 %v711, %v751
      %v760 = vmul.f32 %v712, %v752
      %v761 = vmul.f32 %v713, %v753
      %v762 = vmul.f32 %v714, %v754
      %v763 = vmul.f32 %v755, %v755
      %v764 = vmul.f32 %v756, %v756
      %v765 = vmul.f32 %v757, %v757
      %v766 = vmul.f32 %v758, %v758
      %v767 = vmul.f32 %v759, %v759
      %v768 = vmul.f32 %v760, %v760
      %v769 = vmul.f32 %v761, %v761
      %v770 = vmul.f32 %v762, %v762
      %v771 = vadd.f32 %v763, %v764
      %v772 = vadd.f32 %v771, %v765
      %v773 = vadd.f32 %v772, %v766
      %v774 = vadd.f32 %v773, %v767
      %v775 = vadd.f32 %v774, %v768
      %v776 = vadd.f32 %v775, %v769
      %v777 = vadd.f32 %v776, %v770
      %778 = vadd.xlane.f32.xlu0 %v777
      %v779 = vpop.xlane.xlu0 %778
      %v780 = vrot.slane %v779, 4
      %v781 = vadd.f32 %v779, %v780
      %v782 = vrot.slane %v781, 2
      %v783 = vadd.f32 %v781, %v782
      %v784 = vrot.slane %v783, 1
      %v785 = vadd.f32 %v783, %v784
      %s786 = vtos %v785
      %v787 = vstv %s786
      %v788 = vmax.f32 %v787, 1e-24
      %v789 = vrsqrt.pop %v788
      %v790 = vmul.f32 %v755, %v789
      %v791 = vmul.f32 %v756, %v789
      %v792 = vmul.f32 %v757, %v789
      %v793 = vmul.f32 %v758, %v789
      %v794 = vmul.f32 %v759, %v789
      %v795 = vmul.f32 %v760, %v789
      %v796 = vmul.f32 %v761, %v789
      %v797 = vmul.f32 %v762, %v789
      %798 = vst [vmem:[#allocation9] sm:$0xff] %v790
      %799 = vst [vmem:[#allocation9 + $0x8] sm:$0xff] %v791
      %800 = vst [vmem:[#allocation9 + $0x10] sm:$0xff] %v792
      %801 = vst [vmem:[#allocation9 + $0x18] sm:$0xff] %v793
      %802 = vst [vmem:[#allocation9 + $0x20] sm:$0xff] %v794
      %803 = vst [vmem:[#allocation9 + $0x28] sm:$0xff] %v795
      %804 = vst [vmem:[#allocation9 + $0x30] sm:$0xff] %v796
      %805 = vst [vmem:[#allocation9 + $0x38] sm:$0xff] %v797
      %v806 = vld [vmem:[%s663] sm:$0xff]
      %v807 = vld [vmem:[%s663 + $0x8] sm:$0xff]
      %v808 = vld [vmem:[%s663 + $0x10] sm:$0xff]
      %v809 = vld [vmem:[%s663 + $0x18] sm:$0xff]
      %v810 = vld [vmem:[%s663 + $0x20] sm:$0xff]
      %v811 = vld [vmem:[%s663 + $0x28] sm:$0xff]
      %v812 = vld [vmem:[%s663 + $0x30] sm:$0xff]
      %v813 = vld [vmem:[%s663 + $0x38] sm:$0xff]
      %v814 = vmul.f32 %v806, %v806
      %v815 = vmul.f32 %v807, %v807
      %v816 = vmul.f32 %v808, %v808
      %v817 = vmul.f32 %v809, %v809
      %v818 = vmul.f32 %v810, %v810
      %v819 = vmul.f32 %v811, %v811
      %v820 = vmul.f32 %v812, %v812
      %v821 = vmul.f32 %v813, %v813
      %822 = vadd.xlane.f32.xlu0 %v814
      %v823 = vpop.xlane.xlu0 %822
      %824 = vadd.xlane.f32.xlu0 %v815
      %v825 = vpop.xlane.xlu0 %824
      %826 = vadd.xlane.f32.xlu0 %v816
      %v827 = vpop.xlane.xlu0 %826
      %828 = vadd.xlane.f32.xlu0 %v817
      %v829 = vpop.xlane.xlu0 %828
      %830 = vadd.xlane.f32.xlu0 %v818
      %v831 = vpop.xlane.xlu0 %830
      %832 = vadd.xlane.f32.xlu0 %v819
      %v833 = vpop.xlane.xlu0 %832
      %834 = vadd.xlane.f32.xlu0 %v820
      %v835 = vpop.xlane.xlu0 %834
      %836 = vadd.xlane.f32.xlu0 %v821
      %v837 = vpop.xlane.xlu0 %836
      %v838 = vmax.f32 %v823, 1e-24
      %v839 = vmax.f32 %v825, 1e-24
      %v840 = vmax.f32 %v827, 1e-24
      %v841 = vmax.f32 %v829, 1e-24
      %v842 = vmax.f32 %v831, 1e-24
      %v843 = vmax.f32 %v833, 1e-24
      %v844 = vmax.f32 %v835, 1e-24
      %v845 = vmax.f32 %v837, 1e-24
      %v846 = vrsqrt.pop %v838
      %v847 = vrsqrt.pop %v839
      %v848 = vrsqrt.pop %v840
      %v849 = vrsqrt.pop %v841
      %v850 = vrsqrt.pop %v842
      %v851 = vrsqrt.pop %v843
      %v852 = vrsqrt.pop %v844
      %v853 = vrsqrt.pop %v845
      %v854 = vmul.f32 %v806, %v846
      %v855 = vmul.f32 %v807, %v847
      %v856 = vmul.f32 %v808, %v848
      %v857 = vmul.f32 %v809, %v849
      %v858 = vmul.f32 %v810, %v850
      %v859 = vmul.f32 %v811, %v851
      %v860 = vmul.f32 %v812, %v852
      %v861 = vmul.f32 %v813, %v853
      %v862 = vmul.f32 %v854, %v854
      %v863 = vmul.f32 %v855, %v855
      %v864 = vmul.f32 %v856, %v856
      %v865 = vmul.f32 %v857, %v857
      %v866 = vmul.f32 %v858, %v858
      %v867 = vmul.f32 %v859, %v859
      %v868 = vmul.f32 %v860, %v860
      %v869 = vmul.f32 %v861, %v861
      %v870 = vadd.f32 %v862, %v863
      %v871 = vadd.f32 %v870, %v864
      %v872 = vadd.f32 %v871, %v865
      %v873 = vadd.f32 %v872, %v866
      %v874 = vadd.f32 %v873, %v867
      %v875 = vadd.f32 %v874, %v868
      %v876 = vadd.f32 %v875, %v869
      %877 = vadd.xlane.f32.xlu0 %v876
      %v878 = vpop.xlane.xlu0 %877
      %v879 = vrot.slane %v878, 4
      %v880 = vadd.f32 %v878, %v879
      %v881 = vrot.slane %v880, 2
      %v882 = vadd.f32 %v880, %v881
      %v883 = vrot.slane %v882, 1
      %v884 = vadd.f32 %v882, %v883
      %s885 = vtos %v884
      %v886 = vstv %s885
      %v887 = vmax.f32 %v886, 1e-24
      %v888 = vrsqrt.pop %v887
      %v889 = vmul.f32 %v854, %v888
      %v890 = vmul.f32 %v855, %v888
      %v891 = vmul.f32 %v856, %v888
      %v892 = vmul.f32 %v857, %v888
      %v893 = vmul.f32 %v858, %v888
      %v894 = vmul.f32 %v859, %v888
      %v895 = vmul.f32 %v860, %v888
      %v896 = vmul.f32 %v861, %v888
      %s897 = scalar_lea.vmem [#allocation9], 64
      %898 = vst [vmem:[%s897] sm:$0xff] %v889
      %899 = vst [vmem:[%s897 + $0x8] sm:$0xff] %v890
      %900 = vst [vmem:[%s897 + $0x10] sm:$0xff] %v891
      %901 = vst [vmem:[%s897 + $0x18] sm:$0xff] %v892
      %902 = vst [vmem:[%s897 + $0x20] sm:$0xff] %v893
      %903 = vst [vmem:[%s897 + $0x28] sm:$0xff] %v894
      %904 = vst [vmem:[%s897 + $0x30] sm:$0xff] %v895
      %905 = vst [vmem:[%s897 + $0x38] sm:$0xff] %v896
    $region33: #{tpu_custom_call.1} parent=1 // pred_fallthru
      _
    // Predicated region
    $region34: #{tpu_custom_call.1} parent=1 // pred_check
      _
    $region35: #{tpu_custom_call.1} parent=1 // pred_check_branch
      %907 = sbr.rel (0) target = $region37
    $region36: #{tpu_custom_call.1} parent=1 // pred_region
      %s909 = ssub.s32 2048, 2048
      %910 = vsyncadd [#allocation5], %s909
      %s911 = sshll.u32 [#allocation9], 4
      %s912 = int_to_ptr.vmem [resolvable:$true] %s911
      %917 = dma.vmem_to_hbm [thread:$0]  %s912, 2048, %s3, [#allocation5], 128, 128, 8
    $region37: #{tpu_custom_call.1} parent=1 // pred_fallthru
      _
    // Predicated region
    $region38: #{tpu_custom_call.1} parent=1 // pred_check
      _
    $region39: #{tpu_custom_call.1} parent=1 // pred_check_branch
      %919 = sbr.rel (0) target = $region41
    $region40: #{tpu_custom_call.1} parent=1 // pred_region
      %920 = dma.done [#allocation5], 2048
    $region41: #{tpu_custom_call.1} parent=1 // pred_fallthru
      _
    %921 = vsyncpa [#allocation4], 1
    %922 = vsyncpa [#allocation7], 1
    %923 = vsyncpa [#allocation5], 1

</llo_original>
